<compile_context>
chip_gen: v7x
topology: tpu7x:2x2x1
jax: 0.10.0
libtpu: 0.0.40
codegen_flags: <defaults>
</compile_context>

<pallas_src>
import jax
import jax.numpy as jnp
from jax.experimental import pallas as pl
from jax.experimental.pallas import tpu as pltpu


def _round_up(x: int, m: int) -> int:
    return (x + m - 1) // m * m


# ----------------------------- Pallas kernel --------------------------------
def _gcn_fused_kernel(x_ref, adj_ref, w_ref, b_ref, out_ref, h_ref, sup_ref):
    """Fused 3-layer GCN body.

    grid = (3 layers, N_pad // TM node-row tiles); the layer axis is OUTERMOST.

      h_ref   : (N_pad, Fp) f32  VMEM scratch - current layer's input features
      sup_ref : (N_pad, Fp) bf16 VMEM scratch - h @ W of the current layer

    Per row tile r:   out_rows = adj[r*TM:(r+1)*TM, :] @ sup + b  (+ReLU, layers 0/1)
    The new rows overwrite h in place (safe: sup already holds h @ W).
    """
    layer = pl.program_id(0)
    rt = pl.program_id(1)
    tm = adj_ref.shape[0]  # static row-tile size

    # Load the (padded, bf16) input features once, at the very first grid step.
    @pl.when(jnp.logical_and(layer == 0, rt == 0))
    def _():
        h_ref[...] = x_ref[...].astype(jnp.float32)

    # Once per layer (first row tile): dense support = h @ W for ALL nodes.
    # MXU, bf16 inputs / f32 accumulation; result stored as bf16 for the
    # second (N^2-sized) matmul.
    @pl.when(rt == 0)
    def _():
        sup_ref[...] = jnp.dot(
            h_ref[...].astype(jnp.bfloat16),
            w_ref[0],
            preferred_element_type=jnp.float32,
        ).astype(jnp.bfloat16)

    # Per node-row tile: neighborhood aggregation + bias (+ ReLU on layers 0/1).
    o = jnp.dot(adj_ref[...], sup_ref[...], preferred_element_type=jnp.float32)
    o = o + b_ref[0]  # (1, Fp) broadcast over rows, f32
    # ReLU on layers 0/1 only: max(o, 0) vs. max(o, -inf) == o (scalar select).
    o = jnp.maximum(o, jnp.where(layer < 2, 0.0, -jnp.inf))

    # Overwrite this layer's rows of h in place for the next layer.
    row0 = pl.multiple_of(rt * tm, tm)
    h_ref[pl.ds(row0, tm), :] = o

    # Lane-dense (128-wide) f32 output tile; the layer-2 write is the one that
    # survives in HBM (output block index depends only on the row tile).
    out_ref[...] = o.astype(out_ref.dtype)


# ------------------------------ host wrapper ---------------------------------
def gcn_forward_pallas(x, adj, params, *, row_tile=256):
    """Full 3-layer GCN forward in a single fused pallas_call."""
    N, nfeat = x.shape
    nhid = params["w1"].shape[1]
    f32, bf16 = jnp.float32, jnp.bfloat16

    Fp = _round_up(max(nfeat, nhid), 128)  # lane-dense feature width
    if N <= row_tile:
        n_pad = _round_up(N, 16)           # bf16 sublane packing = 16 rows
        tm = n_pad
    else:
        n_pad = _round_up(N, row_tile)
        tm = row_tile
    n_rt = n_pad // tm

    # Zero-pad everything (exact: padded rows/cols never influence real ones).
    xp = jnp.zeros((n_pad, Fp), f32).at[:N, :nfeat].set(x).astype(bf16)
    adjp = jnp.zeros((n_pad, n_pad), f32).at[:N, :N].set(adj).astype(bf16)

    def pad_w(w):
        fi, fo = w.shape
        return jnp.zeros((Fp, Fp), f32).at[:fi, :fo].set(w)

    def pad_b(b):
        fo = b.shape[-1]
        return jnp.zeros((1, Fp), f32).at[:, :fo].set(b.reshape(1, fo))

    w_stack = jnp.stack(
        [pad_w(params["w1"]), pad_w(params["w2"]), pad_w(params["w3"])]
    ).astype(bf16)                                            # (3, Fp, Fp) bf16
    b_stack = jnp.stack(
        [pad_b(params["b1"]), pad_b(params["b2"]), pad_b(params["b3"])]
    )                                                         # (3, 1, Fp) f32

    out = pl.pallas_call(
        _gcn_fused_kernel,
        out_shape=jax.ShapeDtypeStruct((n_pad, Fp), f32),
        grid_spec=pltpu.PrefetchScalarGridSpec(
            num_scalar_prefetch=0,
            grid=(3, n_rt),  # (layer, node-row tile); layer outermost
            in_specs=[
                pl.BlockSpec((n_pad, Fp), lambda l, r: (0, 0)),     # x   (bf16)
                pl.BlockSpec((tm, n_pad), lambda l, r: (r, 0)),     # adj (bf16) row tile
                pl.BlockSpec((1, Fp, Fp), lambda l, r: (l, 0, 0)),  # stacked W (bf16)
                pl.BlockSpec((1, 1, Fp), lambda l, r: (l, 0, 0)),   # stacked b (f32)
            ],
            out_specs=pl.BlockSpec((tm, Fp), lambda l, r: (r, 0)),
            scratch_shapes=[
                pltpu.VMEM((n_pad, Fp), f32),    # h   : resident node features
                pltpu.VMEM((n_pad, Fp), bf16),   # sup : h @ W of current layer
            ],
        ),
        # Both grid axes carry state (h / sup scratches) -> sequential.
        compiler_params=pltpu.CompilerParams(
            dimension_semantics=("arbitrary", "arbitrary")),
    )(xp, adjp, w_stack, b_stack)

    return out[:N, :nfeat]


gcn_forward = jax.jit(gcn_forward_pallas, static_argnames=("row_tile",))


# ------------------------------- GCN params ----------------------------------
def init_gcn_params(key, nfeat, nhid):
    """Matches GraphConvolution.reset_parameters: uniform(-1/sqrt(out), 1/sqrt(out))."""
    ks = jax.random.split(key, 6)

    def layer(kw, kb, fin, fout):
        bound = 1.0 / jnp.sqrt(jnp.float32(fout))
        w = jax.random.uniform(kw, (fin, fout), jnp.float32, -bound, bound)
        b = jax.random.uniform(kb, (1, fout), jnp.float32, -bound, bound)
        return w, b

    w1, b1 = layer(ks[0], ks[1], nfeat, nhid)
    w2, b2 = layer(ks[2], ks[3], nhid, nhid)
    w3, b3 = layer(ks[4], ks[5], nhid, nfeat)
    return dict(w1=w1, b1=b1, w2=w2, b2=b2, w3=w3, b3=b3)


# ------------------------------- references ----------------------------------
def gcn_forward_ref(x, adj, params, match_kernel_precision=True):
    """Plain-JAX reference. With match_kernel_precision=True it mirrors the
    kernel's bf16-input / f32-accumulation matmuls exactly."""
    bf16 = jnp.bfloat16
    if match_kernel_precision:
        adj_c = adj.astype(bf16)
        cast = lambda a: a.astype(bf16)
    else:
        adj_c = adj
        cast = lambda a: a

    ws = [params["w1"], params["w2"], params["w3"]]
    bs = [params["b1"], params["b2"], params["b3"]]
    h = x
    for i in range(3):
        sup = jnp.dot(cast(h), cast(ws[i]), preferred_element_type=jnp.float32)
        if match_kernel_precision:
            sup = sup.astype(bf16)
        o = jnp.dot(adj_c, sup, preferred_element_type=jnp.float32) + bs[i]
        h = jnp.maximum(o, 0.0) if i < 2 else o
    return h


# --------------------------------- main ---------------------------------------
if __name__ == "__main__":
    key = jax.random.PRNGKey(0)
    k_x, k_a, k_p = jax.random.split(key, 3)

    N, nfeat, nhid = 16, 8, 32  # small synthetic graph
    # TODO(synk): GCN.__init__ takes `dropout` but forward() never uses it; omitted.

    x = jax.random.normal(k_x, (N, nfeat), jnp.float32)

    # Symmetric adjacency with self-loops, symmetrically normalized D^-1/2 A D^-1/2
    a = (jax.random.uniform(k_a, (N, N)) < 0.3).astype(jnp.float32)
    a = jnp.maximum(a, a.T) + jnp.eye(N, dtype=jnp.float32)
    d_inv_sqrt = 1.0 / jnp.sqrt(a.sum(axis=1))
    adj = a * d_inv_sqrt[:, None] * d_inv_sqrt[None, :]

    params = init_gcn_params(k_p, nfeat, nhid)

    out = gcn_forward(x, adj, params)
    jax.block_until_ready(out)

    ref_matched = gcn_forward_ref(x, adj, params, match_kernel_precision=True)
    ref_f32 = gcn_forward_ref(x, adj, params, match_kernel_precision=False)

    assert out.shape == (N, nfeat)
    assert jnp.allclose(out, ref_matched, atol=2e-3, rtol=2e-3), "mismatch vs bf16-matched reference"
    assert jnp.allclose(out, ref_f32, atol=5e-2, rtol=5e-2), "mismatch vs f32 reference"

    print("KERNEL_OK")
</pallas_src>

<mosaic_0001>
module attributes {stable_mosaic.version = 11 : i64} {
  func.func @_gcn_fused_kernel(%arg0: i32, %arg1: i32, %arg2: memref<16x128xbf16, #tpu.memory_space<vmem>>, %arg3: memref<16x16xbf16, #tpu.memory_space<vmem>>, %arg4: memref<1x128x128xbf16, #tpu.memory_space<vmem>>, %arg5: memref<1x1x128xf32, #tpu.memory_space<vmem>>, %arg6: memref<16x128xf32, #tpu.memory_space<vmem>>, %arg7: memref<16x128xf32, #tpu.memory_space<vmem>>, %arg8: memref<16x128xbf16, #tpu.memory_space<vmem>>) attributes {dimension_semantics = [#tpu.dimension_semantics<arbitrary>, #tpu.dimension_semantics<arbitrary>], iteration_bounds = array<i64: 3, 1>, scalar_prefetch = 0 : i64, scratch_operands = 2 : i64, tpu.core_type = #tpu.core_type<tc>, window_params = [{pipeline_mode = #tpu.pipeline_mode<synchronous>, transform_indices = @transform_0, window_bounds = array<i64: 16, 128>}, {transform_indices = @transform_1, window_bounds = array<i64: 16, 16>}, {transform_indices = @transform_2, window_bounds = array<i64: 1, 128, 128>}, {transform_indices = @transform_3, window_bounds = array<i64: 1, 1, 128>}, {transform_indices = @transform_4, window_bounds = array<i64: 16, 128>}]} {
    %c0_i32 = arith.constant 0 : i32
    %0 = arith.cmpi eq, %arg0, %c0_i32 : i32
    %c0_i32_0 = arith.constant 0 : i32
    %1 = arith.cmpi eq, %arg1, %c0_i32_0 : i32
    %2 = arith.andi %0, %1 : i1
    %3 = arith.extui %2 : i1 to i32
    %c0_i32_1 = arith.constant 0 : i32
    %4 = arith.cmpi ne, %3, %c0_i32_1 : i32
    scf.if %4 {
      %c0_15 = arith.constant 0 : index
      %c0_16 = arith.constant 0 : index
      %24 = vector.load %arg2[%c0_15, %c0_16] : memref<16x128xbf16, #tpu.memory_space<vmem>>, vector<16x128xbf16>
      %25 = arith.extf %24 : vector<16x128xbf16> to vector<16x128xf32>
      %c0_17 = arith.constant 0 : index
      %c0_18 = arith.constant 0 : index
      %26 = vector.load %arg7[%c0_17, %c0_18] : memref<16x128xf32, #tpu.memory_space<vmem>>, vector<16x128xf32>
      tpu.vector_store %arg7[%c0_17, %c0_18], %25 {strides = array<i32>} : memref<16x128xf32, #tpu.memory_space<vmem>>, vector<16x128xf32>,
    } else {
    }
    %c0_i32_2 = arith.constant 0 : i32
    %5 = arith.cmpi eq, %arg1, %c0_i32_2 : i32
    %6 = arith.extui %5 : i1 to i32
    %c0_i32_3 = arith.constant 0 : i32
    %7 = arith.cmpi ne, %6, %c0_i32_3 : i32
    scf.if %7 {
      %c0_15 = arith.constant 0 : index
      %c0_16 = arith.constant 0 : index
      %24 = vector.load %arg7[%c0_15, %c0_16] : memref<16x128xf32, #tpu.memory_space<vmem>>, vector<16x128xf32>
      %25 = arith.truncf %24 : vector<16x128xf32> to vector<16x128xbf16>
      %c0_17 = arith.constant 0 : index
      %c0_18 = arith.constant 0 : index
      %c0_19 = arith.constant 0 : index
      %26 = vector.load %arg4[%c0_17, %c0_18, %c0_19] : memref<1x128x128xbf16, #tpu.memory_space<vmem>>, vector<1x128x128xbf16>
      %27 = vector.shape_cast %26 : vector<1x128x128xbf16> to vector<128x128xbf16>
      %cst_20 = arith.constant dense<0.000000e+00> : vector<16x128xf32>
      %28 = tpu.matmul %25, %27, %cst_20 {dimension_numbers = #tpu.dot_dimension_numbers<[1], [0], [0], [1], [0, 0, 1, 1], [], []>} : vector<16x128xbf16>, vector<128x128xbf16>, vector<16x128xf32> -> vector<16x128xf32>
      %29 = arith.truncf %28 : vector<16x128xf32> to vector<16x128xbf16>
      %c0_21 = arith.constant 0 : index
      %c0_22 = arith.constant 0 : index
      %30 = vector.load %arg8[%c0_21, %c0_22] : memref<16x128xbf16, #tpu.memory_space<vmem>>, vector<16x128xbf16>
      tpu.vector_store %arg8[%c0_21, %c0_22], %29 {strides = array<i32>} : memref<16x128xbf16, #tpu.memory_space<vmem>>, vector<16x128xbf16>,
    } else {
    }
    %c0 = arith.constant 0 : index
    %c0_4 = arith.constant 0 : index
    %8 = vector.load %arg3[%c0, %c0_4] : memref<16x16xbf16, #tpu.memory_space<vmem>>, vector<16x16xbf16>
    %c0_5 = arith.constant 0 : index
    %c0_6 = arith.constant 0 : index
    %9 = vector.load %arg8[%c0_5, %c0_6] : memref<16x128xbf16, #tpu.memory_space<vmem>>, vector<16x128xbf16>
    %cst = arith.constant dense<0.000000e+00> : vector<16x128xf32>
    %10 = tpu.matmul %8, %9, %cst {dimension_numbers = #tpu.dot_dimension_numbers<[1], [0], [0], [1], [0, 0, 1, 1], [], []>} : vector<16x16xbf16>, vector<16x128xbf16>, vector<16x128xf32> -> vector<16x128xf32>
    %c0_7 = arith.constant 0 : index
    %c0_8 = arith.constant 0 : index
    %c0_9 = arith.constant 0 : index
    %11 = vector.load %arg5[%c0_7, %c0_8, %c0_9] : memref<1x1x128xf32, #tpu.memory_space<vmem>>, vector<1x1x128xf32>
    %12 = vector.shape_cast %11 : vector<1x1x128xf32> to vector<1x128xf32>
    %13 = vector.broadcast %12 : vector<1x128xf32> to vector<16x128xf32>
    %14 = arith.addf %10, %13 : vector<16x128xf32>
    %c2_i32 = arith.constant 2 : i32
    %15 = arith.cmpi slt, %arg0, %c2_i32 : i32
    %cst_10 = arith.constant 0.000000e+00 : f32
    %cst_11 = arith.constant 0xFF800000 : f32
    %16 = arith.select %15, %cst_10, %cst_11 : f32
    %17 = vector.broadcast %16 : f32 to vector<16x128xf32>
    %18 = arith.maximumf %14, %17 : vector<16x128xf32>
    %c16_i32 = arith.constant 16 : i32
    %19 = arith.muli %arg1, %c16_i32 : i32
    %20 = tpu.assume_multiple %19, 16 : i32
    %21 = arith.index_cast %20 : i32 to index
    %c0_12 = arith.constant 0 : index
    %22 = vector.load %arg7[%21, %c0_12] : memref<16x128xf32, #tpu.memory_space<vmem>>, vector<16x128xf32>
    tpu.vector_store %arg7[%21, %c0_12], %18 {strides = array<i32>} : memref<16x128xf32, #tpu.memory_space<vmem>>, vector<16x128xf32>,
    %c0_13 = arith.constant 0 : index
    %c0_14 = arith.constant 0 : index
    %23 = vector.load %arg6[%c0_13, %c0_14] : memref<16x128xf32, #tpu.memory_space<vmem>>, vector<16x128xf32>
    tpu.vector_store %arg6[%c0_13, %c0_14], %18 {strides = array<i32>} : memref<16x128xf32, #tpu.memory_space<vmem>>, vector<16x128xf32>,
    return
  }
  func.func @transform_0(%arg0: i32, %arg1: i32) -> (i32, i32) {
    %c0_i32 = arith.constant 0 : i32
    %c0_i32_0 = arith.constant 0 : i32
    %c0_i32_1 = arith.constant 0 : i32
    return %c0_i32, %c0_i32_0 : i32, i32
  }
  func.func @transform_1(%arg0: i32, %arg1: i32) -> (i32, i32) {
    %c0_i32 = arith.constant 0 : i32
    %c0_i32_0 = arith.constant 0 : i32
    return %arg1, %c0_i32 : i32, i32
  }
  func.func @transform_2(%arg0: i32, %arg1: i32) -> (i32, i32, i32) {
    %c0_i32 = arith.constant 0 : i32
    %c0_i32_0 = arith.constant 0 : i32
    %c0_i32_1 = arith.constant 0 : i32
    return %arg0, %c0_i32, %c0_i32_0 : i32, i32, i32
  }
  func.func @transform_3(%arg0: i32, %arg1: i32) -> (i32, i32, i32) {
    %c0_i32 = arith.constant 0 : i32
    %c0_i32_0 = arith.constant 0 : i32
    %c0_i32_1 = arith.constant 0 : i32
    return %arg0, %c0_i32, %c0_i32_0 : i32, i32, i32
  }
  func.func @transform_4(%arg0: i32, %arg1: i32) -> (i32, i32) {
    %c0_i32 = arith.constant 0 : i32
    %c0_i32_0 = arith.constant 0 : i32
    return %arg1, %c0_i32 : i32, i32
  }
}

</mosaic_0001>

<llo_original>
// kernel: gcn_forward_pallas.1
$region0: #{gcn_forward_pallas.1}
  #allocation0 [shape = 'u32[]', space=smem, size = 0x4, offset = 0x4, fixed_abs, tag = 'smem constant byte address 0x4 - core index']
  #allocation1 [shape = 'u32[144,128]{1,0:T(1,128)}', space=vmem, size = 0x12000, scoped, tag = 'internal scratch']
  #allocation2 [shape = 'f32[16,128]{1,0:T(8,128)}', space=vmem, size = 0x2000, scoped, tag = 'scratch operand']
  #allocation3 [shape = 'bf16[16,128]{1,0:T(16,128)(2,1)}', space=vmem, size = 0x1000, scoped, tag = 'scratch operand']
  %s0 = inlined_call_operand.vmem [shape: bf16[16,128], index: 0, kind: input, shape index: {}]
  %s1 = inlined_call_operand.vmem [shape: bf16[16,16], index: 1, kind: input, shape index: {}]
  %s2 = inlined_call_operand.vmem [shape: bf16[3,128,128], index: 2, kind: input, shape index: {}]
  %s3 = inlined_call_operand.vmem [shape: f32[3,1,128], index: 3, kind: input, shape index: {}]
  %s4 = inlined_call_operand.vmem [shape: f32[16,128], index: 4, kind: output, shape index: {}]
  %s5 = sld [smem:[#allocation0]]
  $region57: #{gcn_forward_pallas.1} parent=0
    _
  %s7 = ssub.s32 1, %s5
  %s8 = scalar_select 0, %s7, %s5
  loop: start=0, step=1, limit=5
  $region2: #{gcn_forward_pallas.1} parent=0 // loop_pre_header
    _
  $region3: #{gcn_forward_pallas.1} parent=0 // loop_header
    %s10 = sphi 0, %s14
    %p11 = scmp.ge.s32.totalorder %s10, 5
    %s17 = sphi 0, %s29
    %s18 = sphi 0, %s25
    %s19 = sphi 0, %s17
    %s20 = sphi 0, %s18
    %s21 = sphi 0, %s19
    %s22 = sphi 0, %s20
    %s30 = sphi 0, %s30
    %s32 = sphi 0, %s30
    %s33 = sphi 0, %s32
    %s47 = sphi 0, %s33
    %s53 = sphi 0, %s55
    %s56 = sphi 0, %s53
    %s57 = sphi 0, %s56
    %s73 = sphi 0, %s57
    %s79 = sphi 0, %s81
    %s82 = sphi 0, %s79
    %s83 = sphi 0, %s82
    %s99 = sphi 0, %s83
    %s105 = sphi 0, %s107
    %s108 = sphi 0, %s105
    %s109 = sphi 0, %s108
    %s125 = sphi 0, %s109
    %s131 = sphi 0, %s133
    %s134 = sphi 0, %s131
    %s135 = sphi 0, %s134
    %s151 = sphi 0, %s135
  $region4: #{gcn_forward_pallas.1} parent=0 // loop_header_branch
    %13 = sbr.rel (%p11) target = $region8
  $region5: #{gcn_forward_pallas.1} parent=0 // loop_body
    %s15 = ssub.s32 %s10, 1
    %s16 = ssub.s32 %s10, 2
    %s23 = sadd.s32 1, %s18
    %p24 = scmp.ge.s32.totalorder %s23, 1
    %s25 = scalar_select %p24, 0, %s23
    %s26 = sadd.s32 1, %s17
    %s27 = scalar_select %p24, %s26, %s17
    %p28 = scmp.ge.s32.totalorder %s27, 3
    %s29 = scalar_select %p28, 0, %s27
    %s31 = sadd.s32 %s30, 1
    %p34 = scmp.eq.s32.totalorder %s10, 2
    %p35 = scmp.ne.s32.totalorder %s30, %s32
    %p36 = scmp.eq.s32.totalorder %s10, 0
    %p37 = por %p35, %p36
    %p38 = scmp.ne.s32.totalorder %s30, %s32
    %p39 = scmp.eq.s32.totalorder %s15, 2
    %p40 = por %p38, %p39
    %p41 = scmp.ne.s32.totalorder %s32, %s33
    %p42 = scmp.eq.s32.totalorder %s15, 0
    %p43 = por %p41, %p42
    %p44 = scmp.ne.s32.totalorder %s32, %s33
    %p45 = scmp.eq.s32.totalorder %s16, 2
    %p46 = por %p44, %p45
    %p48 = scmp.ne.s32.totalorder %s33, %s47
    %p49 = scmp.eq.s32.totalorder %s16, 0
    %p50 = por %p48, %p49
    %s51 = ssub.s32 %s18, %s25
    %p52 = scmp.eq.s32.totalorder %s51, 0
    %s54 = sadd.s32 %s53, 1
    %s55 = scalar_select %p52, %s53, %s54
    %p58 = pneg %p52
    %p59 = scmp.eq.s32.totalorder %s10, 2
    %p60 = por %p58, %p59
    %p61 = scmp.ne.s32.totalorder %s53, %s56
    %p62 = scmp.eq.s32.totalorder %s10, 0
    %p63 = por %p61, %p62
    %p64 = scmp.ne.s32.totalorder %s53, %s56
    %p65 = scmp.eq.s32.totalorder %s15, 2
    %p66 = por %p64, %p65
    %p67 = scmp.ne.s32.totalorder %s56, %s57
    %p68 = scmp.eq.s32.totalorder %s15, 0
    %p69 = por %p67, %p68
    %p70 = scmp.ne.s32.totalorder %s56, %s57
    %p71 = scmp.eq.s32.totalorder %s16, 2
    %p72 = por %p70, %p71
    %p74 = scmp.ne.s32.totalorder %s57, %s73
    %p75 = scmp.eq.s32.totalorder %s16, 0
    %p76 = por %p74, %p75
    %s77 = ssub.s32 %s17, %s29
    %p78 = scmp.eq.s32.totalorder %s77, 0
    %s80 = sadd.s32 %s79, 1
    %s81 = scalar_select %p78, %s79, %s80
    %p84 = pneg %p78
    %p85 = scmp.eq.s32.totalorder %s10, 2
    %p86 = por %p84, %p85
    %p87 = scmp.ne.s32.totalorder %s79, %s82
    %p88 = scmp.eq.s32.totalorder %s10, 0
    %p89 = por %p87, %p88
    %p90 = scmp.ne.s32.totalorder %s79, %s82
    %p91 = scmp.eq.s32.totalorder %s15, 2
    %p92 = por %p90, %p91
    %p93 = scmp.ne.s32.totalorder %s82, %s83
    %p94 = scmp.eq.s32.totalorder %s15, 0
    %p95 = por %p93, %p94
    %p96 = scmp.ne.s32.totalorder %s82, %s83
    %p97 = scmp.eq.s32.totalorder %s16, 2
    %p98 = por %p96, %p97
    %p100 = scmp.ne.s32.totalorder %s83, %s99
    %p101 = scmp.eq.s32.totalorder %s16, 0
    %p102 = por %p100, %p101
    %s103 = ssub.s32 %s17, %s29
    %p104 = scmp.eq.s32.totalorder %s103, 0
    %s106 = sadd.s32 %s105, 1
    %s107 = scalar_select %p104, %s105, %s106
    %p110 = pneg %p104
    %p111 = scmp.eq.s32.totalorder %s10, 2
    %p112 = por %p110, %p111
    %p113 = scmp.ne.s32.totalorder %s105, %s108
    %p114 = scmp.eq.s32.totalorder %s10, 0
    %p115 = por %p113, %p114
    %p116 = scmp.ne.s32.totalorder %s105, %s108
    %p117 = scmp.eq.s32.totalorder %s15, 2
    %p118 = por %p116, %p117
    %p119 = scmp.ne.s32.totalorder %s108, %s109
    %p120 = scmp.eq.s32.totalorder %s15, 0
    %p121 = por %p119, %p120
    %p122 = scmp.ne.s32.totalorder %s108, %s109
    %p123 = scmp.eq.s32.totalorder %s16, 2
    %p124 = por %p122, %p123
    %p126 = scmp.ne.s32.totalorder %s109, %s125
    %p127 = scmp.eq.s32.totalorder %s16, 0
    %p128 = por %p126, %p127
    %s129 = ssub.s32 %s18, %s25
    %p130 = scmp.eq.s32.totalorder %s129, 0
    %s132 = sadd.s32 %s131, 1
    %s133 = scalar_select %p130, %s131, %s132
    %p136 = pneg %p130
    %p137 = scmp.eq.s32.totalorder %s10, 2
    %p138 = por %p136, %p137
    %p139 = scmp.ne.s32.totalorder %s131, %s134
    %p140 = scmp.eq.s32.totalorder %s10, 0
    %p141 = por %p139, %p140
    %p142 = scmp.ne.s32.totalorder %s131, %s134
    %p143 = scmp.eq.s32.totalorder %s15, 2
    %p144 = por %p142, %p143
    %p145 = scmp.ne.s32.totalorder %s134, %s135
    %p146 = scmp.eq.s32.totalorder %s15, 0
    %p147 = por %p145, %p146
    %p148 = scmp.ne.s32.totalorder %s134, %s135
    %p149 = scmp.eq.s32.totalorder %s16, 2
    %p150 = por %p148, %p149
    %p152 = scmp.ne.s32.totalorder %s135, %s151
    %p153 = scmp.eq.s32.totalorder %s16, 0
    %p154 = por %p152, %p153
    %p155 = scmp.le.s32.totalorder 1, %s10
    %p156 = scmp.lt.s32.totalorder %s10, 4
    %p157 = pnand %p155, %p156
    %p158 = pneg %p157
    // Predicated region
    $region9: #{gcn_forward_pallas.1} parent=5 // pred_check
      _
    $region10: #{gcn_forward_pallas.1} parent=5 // pred_check_branch
      %160 = sbr.rel (%p157) target = $region12
    $region11: #{gcn_forward_pallas.1} parent=5 // pred_region
      %s161 = ssub.s32 %s10, 1
      // Predicated region
      $region13: #{gcn_forward_pallas.1} parent=11 // pred_check
        %p162 = pneg %p43
      $region14: #{gcn_forward_pallas.1} parent=11 // pred_check_branch
        %164 = sbr.rel (%p162) target = $region16
      $region15: #{gcn_forward_pallas.1} parent=11 // pred_region
        _
      $region16: #{gcn_forward_pallas.1} parent=11 // pred_fallthru
        _
      // Predicated region
      $region17: #{gcn_forward_pallas.1} parent=11 // pred_check
        %p165 = pneg %p69
      $region18: #{gcn_forward_pallas.1} parent=11 // pred_check_branch
        %167 = sbr.rel (%p165) target = $region20
      $region19: #{gcn_forward_pallas.1} parent=11 // pred_region
        %s168 = smul.u32 2, %s20
        %p169 = scmp.lt.s32.totalorder %s168, 1
        %s170 = scalar_select %p169, %s168, 1
        %s171 = smul.addr %s170, 4
        %s172 = scalar_lea.vmem %s1, %s171
        %s173 = smul.u32 2, %s20
      $region20: #{gcn_forward_pallas.1} parent=11 // pred_fallthru
        _
    $region12: #{gcn_forward_pallas.1} parent=5 // pred_fallthru
      _
    %p174 = scmp.lt.s32.totalorder %s10, 3
    // Predicated region
    $region21: #{gcn_forward_pallas.1} parent=5 // pred_check
      %p175 = pneg %p174
    $region22: #{gcn_forward_pallas.1} parent=5 // pred_check_branch
      %177 = sbr.rel (%p175) target = $region24
    $region23: #{gcn_forward_pallas.1} parent=5 // pred_region
      // Predicated region
      $region25: #{gcn_forward_pallas.1} parent=23 // pred_check
        %p178 = pneg %p89
      $region26: #{gcn_forward_pallas.1} parent=23 // pred_check_branch
        %180 = sbr.rel (%p178) target = $region28
      $region27: #{gcn_forward_pallas.1} parent=23 // pred_region
        %p181 = scmp.lt.s32.totalorder %s17, 2
        %s182 = scalar_select %p181, %s17, 2
        %s183 = smul.addr %s182, 16
        %s184 = smul.addr %s183, 4
        %s185 = scalar_lea.vmem %s2, %s184
      $region28: #{gcn_forward_pallas.1} parent=23 // pred_fallthru
        _
      // Predicated region
      $region29: #{gcn_forward_pallas.1} parent=23 // pred_check
        %p186 = pneg %p115
      $region30: #{gcn_forward_pallas.1} parent=23 // pred_check_branch
        %188 = sbr.rel (%p186) target = $region32
      $region31: #{gcn_forward_pallas.1} parent=23 // pred_region
        %p189 = scmp.lt.s32.totalorder %s17, 2
        %s190 = scalar_select %p189, %s17, 2
        %s191 = scalar_lea.vmem %s3, %s190
      $region32: #{gcn_forward_pallas.1} parent=23 // pred_fallthru
        _
    $region24: #{gcn_forward_pallas.1} parent=5 // pred_fallthru
      _
    %p192 = scmp.le.s32.totalorder 1, %s10
    %p193 = scmp.lt.s32.totalorder %s10, 4
    %p194 = pnand %p192, %p193
    %p195 = pneg %p194
    // Predicated region
    $region33: #{gcn_forward_pallas.1} parent=5 // pred_check
      _
    $region34: #{gcn_forward_pallas.1} parent=5 // pred_check_branch
      %197 = sbr.rel (%p194) target = $region36
    $region35: #{gcn_forward_pallas.1} parent=5 // pred_region
      %s198 = ssub.s32 %s10, 1
      %p199 = pneg %p43
      %p200 = pneg %p40
      %s201 = smul.u32 2, %s20
      %p202 = scmp.lt.s32.totalorder %s201, 1
      %s203 = scalar_select %p202, %s201, 1
      %s204 = smul.addr %s203, 4
      %s205 = scalar_lea.vmem %s1, %s204
      %p206 = pneg %p69
      %p207 = pneg %p66
      %p208 = scmp.lt.s32.totalorder %s19, 2
      %s209 = scalar_select %p208, %s19, 2
      %s210 = smul.addr %s209, 16
      %s211 = smul.addr %s210, 4
      %s212 = scalar_lea.vmem %s2, %s211
      %p213 = pneg %p95
      %p214 = pneg %p92
      %p215 = scmp.lt.s32.totalorder %s19, 2
      %s216 = scalar_select %p215, %s19, 2
      %s217 = scalar_lea.vmem %s3, %s216
      %p218 = pneg %p121
      %p219 = pneg %p118
      %p220 = pneg %p147
      %p221 = pneg %p144
      %s222 = smul.u32 2, %s20
      %p223 = scmp.lt.s32.totalorder %s222, 1
      %s224 = scalar_select %p223, %s222, 1
      %s225 = smul.addr %s224, 8
      %s226 = scalar_lea.vmem %s4, %s225
      %s227 = smul.u32 2, %s20
      %p228 = scmp.lt.s32.totalorder %s227, 1
      %s229 = scalar_select %p228, %s227, 1
      %s230 = smul.addr %s229, 4
      %s231 = scalar_lea.vmem %s1, %s230
      %s232 = smul.u32 2, %s20
      %p233 = scmp.lt.s32.totalorder %s19, 2
      %s234 = scalar_select %p233, %s19, 2
      %s235 = smul.addr %s234, 16
      %s236 = smul.addr %s235, 4
      %s237 = scalar_lea.vmem %s2, %s236
      %p238 = scmp.lt.s32.totalorder %s19, 2
      %s239 = scalar_select %p238, %s19, 2
      %s240 = scalar_lea.vmem %s3, %s239
      %s241 = smul.u32 2, %s20
      %p242 = scmp.lt.s32.totalorder %s241, 1
      %s243 = scalar_select %p242, %s241, 1
      %s244 = smul.addr %s243, 8
      %s245 = scalar_lea.vmem %s4, %s244
      %s246 = smul.u32 2, %s20
      %p248 = scmp.eq.s32.totalorder %s19, 0
      %p249 = scmp.eq.s32.totalorder %s20, 0
      %p250 = pnand %p248, %p249
      %p251 = pneg %p250
      // Predicated region
      $region37: #{gcn_forward_pallas.1} parent=35 // pred_check
        _
      $region38: #{gcn_forward_pallas.1} parent=35 // pred_check_branch
        %253 = sbr.rel (%p250) target = $region40
      $region39: #{gcn_forward_pallas.1} parent=35 // pred_region
        %v254 = vld [vmem:[%s0] sm:$0xf]
        %v255 = vld [vmem:[%s0 + $0x4] sm:$0xf]
        %v256 = vunpack.c.l.bf16 %v254
        %v257 = vunpack.c.l.bf16 %v255
        %258 = vst [vmem:[#allocation2] sm:$0xff] %v256
        %259 = vst [vmem:[#allocation2 + $0x8] sm:$0xff] %v257
      $region40: #{gcn_forward_pallas.1} parent=35 // pred_fallthru
        _
      // Predicated region
      $region41: #{gcn_forward_pallas.1} parent=35 // pred_check
        %p260 = pneg %p249
      $region42: #{gcn_forward_pallas.1} parent=35 // pred_check_branch
        %262 = sbr.rel (%p260) target = $region44
      $region43: #{gcn_forward_pallas.1} parent=35 // pred_region
        %v263 = vld [vmem:[#allocation2] sm:$0xff]
        %v264 = vld [vmem:[#allocation2 + $0x8] sm:$0xff]
        %v265 = vpack.c.bf16 %v264, %v263
        %v266 = vld [vmem:[%s237] sm:$0xf]
        %v267 = vld [vmem:[%s237 + $0x4] sm:$0xf]
        %v268 = vld [vmem:[%s237 + $0x8] sm:$0xf]
        %v269 = vld [vmem:[%s237 + $0xc] sm:$0xf]
        %v270 = vld [vmem:[%s237 + $0x10] sm:$0xf]
        %v271 = vld [vmem:[%s237 + $0x14] sm:$0xf]
        %v272 = vld [vmem:[%s237 + $0x18] sm:$0xf]
        %v273 = vld [vmem:[%s237 + $0x1c] sm:$0xf]
        %v274 = vld [vmem:[%s237 + $0x20] sm:$0xf]
        %v275 = vld [vmem:[%s237 + $0x24] sm:$0xf]
        %v276 = vld [vmem:[%s237 + $0x28] sm:$0xf]
        %v277 = vld [vmem:[%s237 + $0x2c] sm:$0xf]
        %v278 = vld [vmem:[%s237 + $0x30] sm:$0xf]
        %v279 = vld [vmem:[%s237 + $0x34] sm:$0xf]
        %v280 = vld [vmem:[%s237 + $0x38] sm:$0xf]
        %v281 = vld [vmem:[%s237 + $0x3c] sm:$0xf]
        %v298 = vunpack.c.l.b16 %v266
        %v299 = vunpack.c.l.b16 %v267
        %v300 = vunpack.c.l.b16 %v268
        %v301 = vunpack.c.l.b16 %v269
        %v302 = vunpack.c.l.b16 %v270
        %v303 = vunpack.c.l.b16 %v271
        %v304 = vunpack.c.l.b16 %v272
        %v305 = vunpack.c.l.b16 %v273
        %v306 = vunpack.c.l.b16 %v274
        %v307 = vunpack.c.l.b16 %v275
        %v308 = vunpack.c.l.b16 %v276
        %v309 = vunpack.c.l.b16 %v277
        %v310 = vunpack.c.l.b16 %v278
        %v311 = vunpack.c.l.b16 %v279
        %v312 = vunpack.c.l.b16 %v280
        %v313 = vunpack.c.l.b16 %v281
        %v314 = vpack.c.b16 %v299, %v298
        %v315 = vpack.c.b16 %v301, %v300
        %v316 = vpack.c.b16 %v303, %v302
        %v317 = vpack.c.b16 %v305, %v304
        %v318 = vpack.c.b16 %v307, %v306
        %v319 = vpack.c.b16 %v309, %v308
        %v320 = vpack.c.b16 %v311, %v310
        %v321 = vpack.c.b16 %v313, %v312
        %330 = vmatprep.subr.bf16.mxu0 0
        %331 = vmatpush1.bf16.msra.mxu0 %v314
        %332 = vmatprep.subr.bf16.mxu0 0
        %333 = vmatpush1.bf16.msra.mxu0 %v315
        %334 = vmatprep.subr.bf16.mxu0 0
        %335 = vmatpush1.bf16.msra.mxu0 %v316
        %336 = vmatprep.subr.bf16.mxu0 0
        %337 = vmatpush1.bf16.msra.mxu0 %v317
        %338 = vmatprep.subr.bf16.mxu0 0
        %339 = vmatpush1.bf16.msra.mxu0 %v318
        %340 = vmatprep.subr.bf16.mxu0 0
        %341 = vmatpush1.bf16.msra.mxu0 %v319
        %342 = vmatprep.subr.bf16.mxu0 0
        %343 = vmatpush1.bf16.msra.mxu0 %v320
        %344 = vmatprep.subr.bf16.mxu0 0
        %345 = vmatpush1.bf16.msra.mxu0 %v321
        %346 = vmatprep.subr.bf16.mxu0 0
        %347 = vmatpush1.bf16.msra.mxu0 0
        %348 = vmatprep.subr.bf16.mxu0 0
        %349 = vmatpush1.bf16.msra.mxu0 0
        %350 = vmatprep.subr.bf16.mxu0 0
        %351 = vmatpush1.bf16.msra.mxu0 0
        %352 = vmatprep.subr.bf16.mxu0 0
        %353 = vmatpush1.bf16.msra.mxu0 0
        %354 = vmatprep.subr.bf16.mxu0 0
        %355 = vmatpush1.bf16.msra.mxu0 0
        %356 = vmatprep.subr.bf16.mxu0 0
        %357 = vmatpush1.bf16.msra.mxu0 0
        %358 = vmatprep.subr.bf16.mxu0 0
        %359 = vmatpush1.bf16.msra.mxu0 0
        %360 = vmatprep.subr.bf16.mxu0 0
        %361 = vmatpush1.bf16.msra.mxu0 0
        %362 = vmatprep.mubr.bf16.mxu0 0
        %363 = vmatmul.mubr.bf16.gmra.mrb[0].mxu0 %v265
        %v364 = vpop.f32.mrb[0].mxu0
        %v365 = vadd.f32 0.0, %v364
        %v366 = vpop.f32.mrb[0].mxu0
        %v367 = vpop.f32.mrb[0].mxu0
        %v368 = vadd.f32 0.0, %v367
        %v369 = vpop.f32.mrb[0].mxu0
        %370 = vdwg.mxu0
        %v371 = vpack.c.bf16 %v368, %v365
        %372 = vst [vmem:[#allocation3] sm:$0xff] %v371
      $region44: #{gcn_forward_pallas.1} parent=35 // pred_fallthru
        _
      %v373 = vld [vmem:[%s231] sm:$0xf]
      %v374 = vld [vmem:[%s231 + $0x4] sm:$0xf]
      %v375 = vld [vmem:[#allocation3] sm:$0xff]
      %v376 = vld [vmem:[%s240] sm:$0x1]
      %v378 = vlaneseq
      %v379 = vshrl.u32 %v378, 7
      %v380 = vsub.s32 0, %v379
      %v381 = vrot.slane %v376, %v380
      %v385 = vunpack.c.l.b16 %v373
      %v386 = vunpack.c.l.b16 %v374
      %v387 = vpack.c.b16 %v386, %v385
      %vm388 = vcmask 130048
      %v390 = vsel %vm388, %v387, 0
      %392 = vmatprep.subr.bf16.mxu0 0
      %393 = vmatpush1.bf16.msra.mxu0 %v375
      %394 = vmatprep.subr.bf16.mxu0 0
      %395 = vmatpush1.bf16.msra.mxu0 0
      %396 = vmatprep.subr.bf16.mxu0 0
      %397 = vmatpush1.bf16.msra.mxu0 0
      %398 = vmatprep.subr.bf16.mxu0 0
      %399 = vmatpush1.bf16.msra.mxu0 0
      %400 = vmatprep.subr.bf16.mxu0 0
      %401 = vmatpush1.bf16.msra.mxu0 0
      %402 = vmatprep.subr.bf16.mxu0 0
      %403 = vmatpush1.bf16.msra.mxu0 0
      %404 = vmatprep.subr.bf16.mxu0 0
      %405 = vmatpush1.bf16.msra.mxu0 0
      %406 = vmatprep.subr.bf16.mxu0 0
      %407 = vmatpush1.bf16.msra.mxu0 0
      %408 = vmatprep.subr.bf16.mxu0 0
      %409 = vmatpush1.bf16.msra.mxu0 0
      %410 = vmatprep.subr.bf16.mxu0 0
      %411 = vmatpush1.bf16.msra.mxu0 0
      %412 = vmatprep.subr.bf16.mxu0 0
      %413 = vmatpush1.bf16.msra.mxu0 0
      %414 = vmatprep.subr.bf16.mxu0 0
      %415 = vmatpush1.bf16.msra.mxu0 0
      %416 = vmatprep.subr.bf16.mxu0 0
      %417 = vmatpush1.bf16.msra.mxu0 0
      %418 = vmatprep.subr.bf16.mxu0 0
      %419 = vmatpush1.bf16.msra.mxu0 0
      %420 = vmatprep.subr.bf16.mxu0 0
      %421 = vmatpush1.bf16.msra.mxu0 0
      %422 = vmatprep.subr.bf16.mxu0 0
      %423 = vmatpush1.bf16.msra.mxu0 0
      %424 = vmatprep.mubr.bf16.mxu0 0
      %425 = vmatmul.mubr.bf16.gmra.mrb[0].mxu0 %v390
      %v426 = vpop.f32.mrb[0].mxu0
      %v427 = vadd.f32 %v381, %v426
      %v428 = vpop.f32.mrb[0].mxu0
      %v429 = vpop.f32.mrb[0].mxu0
      %v430 = vadd.f32 %v381, %v429
      %v431 = vpop.f32.mrb[0].mxu0
      %432 = vdwg.mxu0
      %p433 = scmp.lt.s32.totalorder %s19, 2
      %s434 = scalar_select %p433, 0.0, -inf
      %v435 = vstv %s434
      %v436 = vmax.f32 %v427, %v435
      %v437 = vmax.f32 %v430, %v435
      %s438 = smul.u32 %s20, 16
      %s439 = scalar_lea.vmem [#allocation2], %s438
      %440 = vst [vmem:[%s439] sm:$0xff] %v436
      %441 = vst [vmem:[%s439 + $0x8] sm:$0xff] %v437
      %442 = vst [vmem:[%s245] sm:$0xff] %v436
      %443 = vst [vmem:[%s245 + $0x8] sm:$0xff] %v437
      %s444 = smul.u32 2, %s20
      %p445 = scmp.lt.s32.totalorder %s444, 1
      %s446 = scalar_select %p445, %s444, 1
      %s447 = smul.addr %s446, 8
      %s448 = scalar_lea.vmem %s4, %s447
      // Predicated region
      $region45: #{gcn_forward_pallas.1} parent=35 // pred_check
        %p449 = pneg %p144
      $region46: #{gcn_forward_pallas.1} parent=35 // pred_check_branch
        %451 = sbr.rel (%p449) target = $region48
      $region47: #{gcn_forward_pallas.1} parent=35 // pred_region
        %s452 = smul.u32 2, %s20
      $region48: #{gcn_forward_pallas.1} parent=35 // pred_fallthru
        _
      // Predicated region
      $region49: #{gcn_forward_pallas.1} parent=35 // pred_check
        %p453 = pneg %p144
      $region50: #{gcn_forward_pallas.1} parent=35 // pred_check_branch
        %455 = sbr.rel (%p453) target = $region52
      $region51: #{gcn_forward_pallas.1} parent=35 // pred_region
        %s456 = smul.u32 2, %s20
        %p457 = scmp.lt.s32.totalorder %s456, 1
        %s458 = scalar_select %p457, %s456, 1
        %s459 = smul.addr %s458, 8
        %s460 = scalar_lea.vmem %s4, %s459
      $region52: #{gcn_forward_pallas.1} parent=35 // pred_fallthru
        _
    $region36: #{gcn_forward_pallas.1} parent=5 // pred_fallthru
      _
    %p461 = scmp.le.s32.totalorder 2, %s10
    // Predicated region
    $region53: #{gcn_forward_pallas.1} parent=5 // pred_check
      %p462 = pneg %p461
    $region54: #{gcn_forward_pallas.1} parent=5 // pred_check_branch
      %464 = sbr.rel (%p462) target = $region56
    $region55: #{gcn_forward_pallas.1} parent=5 // pred_region
      %s465 = ssub.s32 %s10, 2
    $region56: #{gcn_forward_pallas.1} parent=5 // pred_fallthru
      _
  $region6: #{gcn_forward_pallas.1} parent=0 // loop_footer
    %s14 = sadd.s32 1, %s10
  $region7: #{gcn_forward_pallas.1} parent=0 // loop_footer_branch
    %9 = sbr.rel target = $region3
  $region8: #{gcn_forward_pallas.1} parent=0 // loop_exit
    _

</llo_original>
